<compile_context>
chip_gen: v6e
topology: v6e:2x2x1
jax: 0.10.0
libtpu: 0.0.40
codegen_flags: <defaults>
</compile_context>

<pallas_src>
import jax
import jax.numpy as jnp
from jax.experimental import pallas as pl
from jax.experimental.pallas import tpu as pltpu


def _round_up(x, m):
    return ((x + m - 1) // m) * m


def _padded_bytes(shape, dtype):
    """Approximate VMEM footprint of one buffer (last two dims tile-padded)."""
    shape = list(shape)
    if len(shape) >= 2:
        shape[-1] = _round_up(shape[-1], 128)
        shape[-2] = _round_up(shape[-2], 8)
    elif len(shape) == 1:
        shape[0] = _round_up(shape[0], 128)
    n = 1
    for s in shape:
        n *= s
    return int(n) * jnp.dtype(dtype).itemsize


def _vmem_capacity_bytes():
    """Physical VMEM per core (generation-aware); conservative fallback."""
    try:
        cap = int(pltpu.get_tpu_info().vmem_capacity_bytes)
        if cap > 0:
            return cap
    except Exception:
        pass
    return 64 << 20        # v7x per-TensorCore VMEM (most restrictive)


def _vmem_limit(est_bytes, cap_bytes):
    """Scoped VMEM limit: est + headroom, clamped below physical capacity."""
    hi = max(int(cap_bytes) - (4 << 20), 16 << 20)
    return int(min(max(int(est_bytes) + (8 << 20), 32 << 20), hi))


# ---------------------------------------------------------------------------
# Kernels 1/3 and 3/3: tiled matmul + bias (input projection and Wk head)
# Full-K blocks: no K grid axis, no accumulator scratch, no K padding.
# ---------------------------------------------------------------------------

def _matmul_bias_kernel(a_ref, w_ref, b_ref, o_ref):
    a = a_ref[...].astype(jnp.bfloat16)      # in-kernel cast (no wrapper pass)
    acc = jnp.dot(a, w_ref[...], preferred_element_type=jnp.float32)
    o_ref[...] = (acc + b_ref[...]).astype(o_ref.dtype)


def _pick_tn(Np):
    for cand in (512, 384, 256, 128):
        if Np % cand == 0:
            return cand
    return 128   # Np is always a multiple of 128 by construction


def matmul_bias(a, w, bias, *, out_dtype):
    """(M, K) @ (K, Np) + bias[None, :].  w/bias pre-padded so Np % 128 == 0."""
    M, K = a.shape
    K2, Np = w.shape
    assert K == K2 and Np % 128 == 0
    tn = _pick_tn(Np)
    tm = 256 if M >= 256 else _round_up(M, 8)
    Mp = _round_up(M, tm)
    if Mp != M:
        a = jnp.pad(a, ((0, Mp - M), (0, 0)))
    b2 = bias.astype(jnp.float32).reshape(1, Np)

    est = 2 * (_padded_bytes((tm, K), a.dtype)
               + _padded_bytes((K, tn), w.dtype)
               + _padded_bytes((1, tn), jnp.float32)
               + _padded_bytes((tm, tn), out_dtype))
    cap = _vmem_capacity_bytes()

    out = pl.pallas_call(
        _matmul_bias_kernel,
        out_shape=jax.ShapeDtypeStruct((Mp, Np), out_dtype),
        grid_spec=pltpu.PrefetchScalarGridSpec(
            num_scalar_prefetch=0,
            grid=(Mp // tm, Np // tn),
            in_specs=[
                pl.BlockSpec((tm, K), lambda i, j: (i, 0)),    # full-K block
                pl.BlockSpec((K, tn), lambda i, j: (0, j)),    # full-K block
                pl.BlockSpec((1, tn), lambda i, j: (0, j)),
            ],
            out_specs=pl.BlockSpec((tm, tn), lambda i, j: (i, j)),
        ),
        compiler_params=pltpu.CompilerParams(
            dimension_semantics=("parallel", "parallel"),
            vmem_limit_bytes=_vmem_limit(est, cap),
        ),
    )(a, w, b2)
    return out[:M] if Mp != M else out


# ---------------------------------------------------------------------------
# Kernel 2/3: sequential GRU recurrence, gridded over T-chunks (batch-first)
# ---------------------------------------------------------------------------

def _gru_recurrence_kernel(gi_ref, whh_hbm, bhn_ref, h_out_ref,
                           whh_vmem, h_scratch, hc_scratch, dma_sem):
    B, Tc, three_hp = gi_ref.shape
    Hp = three_hp // 3

    @pl.when(pl.program_id(0) == 0)
    def _():
        # One-time: DMA W_hh into a SINGLE VMEM-resident buffer (no double
        # buffering -> fits v7x's 64 MiB at real sizes) and zero the state.
        cp = pltpu.make_async_copy(whh_hbm, whh_vmem, dma_sem)
        cp.start()
        cp.wait()
        h_scratch[...] = jnp.zeros_like(h_scratch)

    # Hoisted out of the serial loop (JAX does not CSE broadcast_in_dim).
    bhn = jnp.broadcast_to(bhn_ref[...], (B, Hp))          # (B, Hp) f32

    def step(tt, carry):
        h = h_scratch[...]                                  # (B, Hp) f32
        gi = gi_ref[:, tt, :]                               # (B, 3Hp) f32 (biases folded)
        # One fused recurrent matmul: (B, Hp) @ (Hp, 3Hp), bf16 in / f32 accum.
        gh = jnp.dot(h.astype(jnp.bfloat16), whh_vmem[...],
                     preferred_element_type=jnp.float32)    # (B, 3Hp) f32
        # Lane-aligned gate slices (each gate starts at a 128-lane boundary).
        r = jax.nn.sigmoid(gi[:, 0 * Hp:1 * Hp] + gh[:, 0 * Hp:1 * Hp])
        z = jax.nn.sigmoid(gi[:, 1 * Hp:2 * Hp] + gh[:, 1 * Hp:2 * Hp])
        n = jnp.tanh(gi[:, 2 * Hp:3 * Hp] + r * (gh[:, 2 * Hp:3 * Hp] + bhn))
        h_new = (1.0 - z) * n + z * h
        h_scratch[...] = h_new
        hc_scratch[:, tt, :] = h_new                        # f32 chunk staging
        return carry

    jax.lax.fori_loop(0, Tc, step, 0)   # unroll=1: keep live vregs small at H=2400

    # One vectorized cast + store of the whole chunk: bf16 HBM writeback without
    # per-timestep packed sub-sublane stores.
    h_out_ref[...] = hc_scratch[...].astype(h_out_ref.dtype)


def _pick_t_chunk(T, B, Hp, resident_bytes, cap_bytes):
    """Largest T-chunk that keeps the single-buffered W_hh + chunk buffers in VMEM."""
    # Per timestep: double-buffered gi (f32) + out (bf16) blocks + f32 chunk scratch.
    per_t = B * Hp * (2 * (3 * 4 + 2) + 4)          # = 32 * B * Hp bytes
    budget = max(int(cap_bytes) * 7 // 10 - int(resident_bytes), per_t)
    tc_max = int(max(1, min(T, 256, budget // per_t)))
    # Prefer a chunk size that divides T (no wasted padded timesteps).
    for tc in range(tc_max, max(1, tc_max // 2) - 1, -1):
        if T % tc == 0:
            return tc
    return tc_max


def gru_recurrence(gi, whh, bhn):
    """gi: (B, T, 3*Hp) f32, gates lane-aligned at multiples of Hp.
    whh: (Hp, 3*Hp) bf16.  bhn: (1, Hp) f32.  Returns context (B, T, Hp) bf16."""
    B, T, three_hp = gi.shape
    Hp = three_hp // 3
    cap = _vmem_capacity_bytes()
    whh_bytes = _padded_bytes(whh.shape, whh.dtype)          # single-buffered
    Tc = _pick_t_chunk(T, B, Hp, whh_bytes, cap)
    Tp = _round_up(T, Tc)
    if Tp != T:
        gi = jnp.pad(gi, ((0, 0), (0, Tp - T), (0, 0)))

    est = (whh_bytes
           + 2 * _padded_bytes((B, Tc, 3 * Hp), jnp.float32)
           + 2 * _padded_bytes((B, Tc, Hp), jnp.bfloat16)
           + _padded_bytes((B, Tc, Hp), jnp.float32)
           + 2 * _padded_bytes((1, Hp), jnp.float32)
           + _padded_bytes((B, Hp), jnp.float32))

    h_all = pl.pallas_call(
        _gru_recurrence_kernel,
        out_shape=jax.ShapeDtypeStruct((B, Tp, Hp), jnp.bfloat16),
        grid_spec=pltpu.PrefetchScalarGridSpec(
            num_scalar_prefetch=0,
            grid=(Tp // Tc,),
            in_specs=[
                pl.BlockSpec((B, Tc, 3 * Hp), lambda t: (0, t, 0)),   # gi chunk
                pl.BlockSpec(memory_space=pl.ANY),                    # W_hh (raw HBM)
                pl.BlockSpec((1, Hp), lambda t: (0, 0)),              # b_hn
            ],
            out_specs=pl.BlockSpec((B, Tc, Hp), lambda t: (0, t, 0)),
            scratch_shapes=[
                pltpu.VMEM((Hp, 3 * Hp), whh.dtype),   # single resident W_hh copy
                pltpu.VMEM((B, Hp), jnp.float32),      # carried hidden state
                pltpu.VMEM((B, Tc, Hp), jnp.float32),  # chunk output staging
                pltpu.SemaphoreType.DMA(()),
            ],
        ),
        compiler_params=pltpu.CompilerParams(
            dimension_semantics=("arbitrary",),        # sequential recurrence
            vmem_limit_bytes=_vmem_limit(est, cap),
        ),
    )(gi, whh, bhn)
    return h_all[:, :T] if Tp != T else h_all


# ---------------------------------------------------------------------------
# Parameters / wrapper
# ---------------------------------------------------------------------------

def init_params(key, enc_dim, ar_dim, dtype=jnp.float32):
    """Deterministic params with PyTorch-like uniform(-1/sqrt(H), 1/sqrt(H)) init."""
    H, E = ar_dim, enc_dim
    ks = jax.random.split(key, 6)
    bound = 1.0 / jnp.sqrt(jnp.array(H, jnp.float32))
    u = lambda k, shape: jax.random.uniform(k, shape, dtype, -bound, bound)
    return dict(
        weight_ih=u(ks[0], (3 * H, E)),   # rows ordered [r, z, n] like torch
        weight_hh=u(ks[1], (3 * H, H)),
        bias_ih=u(ks[2], (3 * H,)),
        bias_hh=u(ks[3], (3 * H,)),
        wk_weight=u(ks[4], (E, H)),       # nn.Linear(ar_dim, enc_dim).weight
        wk_bias=u(ks[5], (E,)),
    )


def _prepare_params(params, weight_dtype=jnp.bfloat16):
    """Transpose to (in, out), lane-align gates to Hp, fold biases, cast bf16."""
    w_ih = params["weight_ih"]                    # (3H, E)
    w_hh = params["weight_hh"]                    # (3H, H)
    H = w_hh.shape[1]
    E = w_ih.shape[1]
    Hp = _round_up(H, 128)
    Ep = _round_up(E, 128)
    b_ih = params["bias_ih"].astype(jnp.float32)
    b_hh = params["bias_hh"].astype(jnp.float32)

    def pad_gate_cols(w_t):                       # (in, 3H) -> (in, 3Hp)
        n_in = w_t.shape[0]
        return jnp.pad(w_t.reshape(n_in, 3, H),
                       ((0, 0), (0, 0), (0, Hp - H))).reshape(n_in, 3 * Hp)

    wi_p = pad_gate_cols(w_ih.T).astype(weight_dtype)                 # (E, 3Hp)
    whh_p = jnp.pad(pad_gate_cols(w_hh.T),
                    ((0, Hp - H), (0, 0))).astype(weight_dtype)       # (Hp, 3Hp)

    # Bias folding: r,z gates use (b_ih + b_hh); n keeps b_hn separate because
    # it is multiplied by r inside the cell (matches torch GRU).
    gi_b = jnp.stack([b_ih[0:H] + b_hh[0:H],
                      b_ih[H:2 * H] + b_hh[H:2 * H],
                      b_ih[2 * H:3 * H]], axis=0)                     # (3, H)
    gi_bias_p = jnp.pad(gi_b, ((0, 0), (0, Hp - H))).reshape(3 * Hp)  # (3Hp,)
    bhn_p = jnp.pad(b_hh[2 * H:3 * H], (0, Hp - H)).reshape(1, Hp)    # (1, Hp)

    wk_p = jnp.pad(params["wk_weight"].T,
                   ((0, Hp - H), (0, Ep - E))).astype(weight_dtype)   # (Hp, Ep)
    bk_p = jnp.pad(params["wk_bias"].astype(jnp.float32), (0, Ep - E))  # (Ep,)
    return wi_p, whh_p, gi_bias_p, bhn_p, wk_p, bk_p, Hp, Ep


@jax.jit
def auto_regressive_forward(x, params):
    """x: (B, T, enc_dim) batch-first, matching the PyTorch module."""
    B, T, E = x.shape
    wi_p, whh_p, gi_bias_p, bhn_p, wk_p, bk_p, Hp, Ep = _prepare_params(params)

    # 1) Input projection: one (B*T, E) @ (E, 3Hp) MXU matmul (batch-first kept,
    #    no transposes; reshape is free in row-major layout).
    gi = matmul_bias(x.reshape(B * T, E), wi_p, gi_bias_p, out_dtype=jnp.float32)
    gi = gi.reshape(B, T, 3 * Hp)

    # 2) Sequential GRU recurrence (single-buffered VMEM-resident W_hh).
    ctx = gru_recurrence(gi, whh_p, bhn_p)                    # (B, T, Hp) bf16

    # 3) Wk head: one (B*T, Hp) @ (Hp, Ep) MXU matmul (consumes bf16 ctx directly).
    out = matmul_bias(ctx.reshape(B * T, Hp), wk_p, bk_p, out_dtype=x.dtype)
    return out[:, :E].reshape(B, T, E)


def reference_forward(x, params):
    """Pure-JAX reference identical to torch GRU(batch_first) + Linear."""
    H = params["weight_hh"].shape[1]
    w_ih, w_hh = params["weight_ih"], params["weight_hh"]
    b_ih, b_hh = params["bias_ih"], params["bias_hh"]
    B, T, E = x.shape
    h0 = jnp.zeros((B, H), jnp.float32)

    def cell(h, x_t):
        gi = x_t @ w_ih.T + b_ih
        gh = h @ w_hh.T + b_hh
        gir, giz, gin = gi[:, :H], gi[:, H:2 * H], gi[:, 2 * H:]
        ghr, ghz, ghn = gh[:, :H], gh[:, H:2 * H], gh[:, 2 * H:]
        r = jax.nn.sigmoid(gir + ghr)
        z = jax.nn.sigmoid(giz + ghz)
        n = jnp.tanh(gin + r * ghn)
        h_new = (1.0 - z) * n + z * h
        return h_new, h_new

    _, ctx = jax.lax.scan(cell, h0, jnp.transpose(x, (1, 0, 2)))
    ctx = jnp.transpose(ctx, (1, 0, 2))                      # (B, T, H)
    return ctx @ params["wk_weight"].T + params["wk_bias"]   # (B, T, E)


if __name__ == "__main__":
    ENC_DIM = 32   # small stand-in for the real 2400 (exercises lane padding)
    AR_DIM = 64    # small stand-in for the real 2400 (Hp = 128 > H)
    B, T = 2, 8

    key = jax.random.PRNGKey(0)
    k_param, k_x = jax.random.split(key)
    params = init_params(k_param, ENC_DIM, AR_DIM)
    x = jax.random.normal(k_x, (B, T, ENC_DIM), jnp.float32)

    out = auto_regressive_forward(x, params)
    out = jax.block_until_ready(out)
    assert out.shape == (B, T, ENC_DIM), out.shape

    # Reference uses the same bf16-rounded weights the kernel stores, so the
    # comparison only measures activation rounding / accumulation order.
    ref_params = dict(params)
    for name in ("weight_ih", "weight_hh", "wk_weight"):
        ref_params[name] = params[name].astype(jnp.bfloat16).astype(jnp.float32)
    ref = reference_forward(x, ref_params)
    max_err = float(jnp.max(jnp.abs(out - ref)))
    assert jnp.allclose(out, ref, atol=3e-2, rtol=3e-2), max_err

    print("KERNEL_OK")
</pallas_src>

<mosaic_0001>
module attributes {stable_mosaic.version = 11 : i64} {
  func.func @_matmul_bias_kernel(%arg0: i32, %arg1: i32, %arg2: memref<16x32xf32, #tpu.memory_space<vmem>>, %arg3: memref<32x384xbf16, #tpu.memory_space<vmem>>, %arg4: memref<1x384xf32, #tpu.memory_space<vmem>>, %arg5: memref<16x384xf32, #tpu.memory_space<vmem>>) attributes {dimension_semantics = [#tpu.dimension_semantics<parallel>, #tpu.dimension_semantics<parallel>], iteration_bounds = array<i64: 1, 1>, scalar_prefetch = 0 : i64, scratch_operands = 0 : i64, tpu.core_type = #tpu.core_type<tc>, window_params = [{transform_indices = @transform_0, window_bounds = array<i64: 16, 32>}, {transform_indices = @transform_1, window_bounds = array<i64: 32, 384>}, {transform_indices = @transform_2, window_bounds = array<i64: 1, 384>}, {transform_indices = @transform_3, window_bounds = array<i64: 16, 384>}]} {
    %c0 = arith.constant 0 : index
    %c0_0 = arith.constant 0 : index
    %0 = vector.load %arg2[%c0, %c0_0] : memref<16x32xf32, #tpu.memory_space<vmem>>, vector<16x32xf32>
    %1 = arith.truncf %0 : vector<16x32xf32> to vector<16x32xbf16>
    %c0_1 = arith.constant 0 : index
    %c0_2 = arith.constant 0 : index
    %2 = vector.load %arg3[%c0_1, %c0_2] : memref<32x384xbf16, #tpu.memory_space<vmem>>, vector<32x384xbf16>
    %cst = arith.constant dense<0.000000e+00> : vector<16x384xf32>
    %3 = tpu.matmul %1, %2, %cst {dimension_numbers = #tpu.dot_dimension_numbers<[1], [0], [0], [1], [0, 0, 1, 1], [], []>} : vector<16x32xbf16>, vector<32x384xbf16>, vector<16x384xf32> -> vector<16x384xf32>
    %c0_3 = arith.constant 0 : index
    %c0_4 = arith.constant 0 : index
    %4 = vector.load %arg4[%c0_3, %c0_4] : memref<1x384xf32, #tpu.memory_space<vmem>>, vector<1x384xf32>
    %5 = vector.broadcast %4 : vector<1x384xf32> to vector<16x384xf32>
    %6 = arith.addf %3, %5 : vector<16x384xf32>
    %c0_5 = arith.constant 0 : index
    %c0_6 = arith.constant 0 : index
    %7 = vector.load %arg5[%c0_5, %c0_6] : memref<16x384xf32, #tpu.memory_space<vmem>>, vector<16x384xf32>
    tpu.vector_store %arg5[%c0_5, %c0_6], %6 {strides = array<i32>} : memref<16x384xf32, #tpu.memory_space<vmem>>, vector<16x384xf32>,
    return
  }
  func.func @transform_0(%arg0: i32, %arg1: i32) -> (i32, i32) {
    %c0_i32 = arith.constant 0 : i32
    %c0_i32_0 = arith.constant 0 : i32
    return %arg0, %c0_i32 : i32, i32
  }
  func.func @transform_1(%arg0: i32, %arg1: i32) -> (i32, i32) {
    %c0_i32 = arith.constant 0 : i32
    %c0_i32_0 = arith.constant 0 : i32
    return %c0_i32, %arg1 : i32, i32
  }
  func.func @transform_2(%arg0: i32, %arg1: i32) -> (i32, i32) {
    %c0_i32 = arith.constant 0 : i32
    %c0_i32_0 = arith.constant 0 : i32
    return %c0_i32, %arg1 : i32, i32
  }
  func.func @transform_3(%arg0: i32, %arg1: i32) -> (i32, i32) {
    %c0_i32 = arith.constant 0 : i32
    return %arg0, %arg1 : i32, i32
  }
}

module attributes {stable_mosaic.version = 11 : i64} {
  func.func @_gru_recurrence_kernel(%arg0: i32, %arg1: memref<2x8x384xf32, #tpu.memory_space<vmem>>, %arg2: memref<128x384xbf16, #tpu.memory_space<any>>, %arg3: memref<1x128xf32, #tpu.memory_space<vmem>>, %arg4: memref<2x8x128xbf16, #tpu.memory_space<vmem>>, %arg5: memref<128x384xbf16, #tpu.memory_space<vmem>>, %arg6: memref<2x128xf32, #tpu.memory_space<vmem>>, %arg7: memref<2x8x128xf32, #tpu.memory_space<vmem>>, %arg8: memref<!tpu.dma_semaphore, #tpu.memory_space<semaphore_mem>>) attributes {dimension_semantics = [#tpu.dimension_semantics<arbitrary>], iteration_bounds = array<i64: 1>, scalar_prefetch = 0 : i64, scratch_operands = 4 : i64, tpu.core_type = #tpu.core_type<tc>, window_params = [{transform_indices = @transform_0, window_bounds = array<i64: 2, 8, 384>}, {}, {pipeline_mode = #tpu.pipeline_mode<synchronous>, transform_indices = @transform_2, window_bounds = array<i64: 1, 128>}, {transform_indices = @transform_3, window_bounds = array<i64: 2, 8, 128>}]} {
    %c0_i32 = arith.constant 0 : i32
    %0 = arith.cmpi eq, %arg0, %c0_i32 : i32
    %1 = arith.extui %0 : i1 to i32
    %c0_i32_0 = arith.constant 0 : i32
    %2 = arith.cmpi ne, %1, %c0_i32_0 : i32
    scf.if %2 {
      tpu.enqueue_dma source(%arg2 : memref<128x384xbf16, #tpu.memory_space<any>>) target(%arg5 : memref<128x384xbf16, #tpu.memory_space<vmem>>) target_semaphore(%arg8 : memref<!tpu.dma_semaphore, #tpu.memory_space<semaphore_mem>>)
      tpu.wait_dma2 semaphore(%arg8 : memref<!tpu.dma_semaphore, #tpu.memory_space<semaphore_mem>>) src(%arg2 : memref<128x384xbf16, #tpu.memory_space<any>>) dst(%arg5 : memref<128x384xbf16, #tpu.memory_space<vmem>>)
      %cst = arith.constant 0.000000e+00 : f32
      %10 = vector.broadcast %cst : f32 to vector<2x128xf32>
      %c0_10 = arith.constant 0 : index
      %c0_11 = arith.constant 0 : index
      %11 = vector.load %arg6[%c0_10, %c0_11] : memref<2x128xf32, #tpu.memory_space<vmem>>, vector<2x128xf32>
      tpu.vector_store %arg6[%c0_10, %c0_11], %10 {strides = array<i32>} : memref<2x128xf32, #tpu.memory_space<vmem>>, vector<2x128xf32>,
    } else {
    }
    %c0 = arith.constant 0 : index
    %c0_1 = arith.constant 0 : index
    %3 = vector.load %arg3[%c0, %c0_1] : memref<1x128xf32, #tpu.memory_space<vmem>>, vector<1x128xf32>
    %4 = vector.shape_cast %3 : vector<1x128xf32> to vector<1x128xf32>
    %5 = vector.broadcast %4 : vector<1x128xf32> to vector<2x128xf32>
    %c0_i32_2 = arith.constant 0 : i32
    %c8_i32 = arith.constant 8 : i32
    %6 = arith.addi %c0_i32_2, %c8_i32 : i32
    %c1_i32 = arith.constant 1 : i32
    scf.for %arg9 = %c0_i32_2 to %6 step %c1_i32  : i32 {
      %c0_10 = arith.constant 0 : index
      %c0_11 = arith.constant 0 : index
      %10 = vector.load %arg6[%c0_10, %c0_11] : memref<2x128xf32, #tpu.memory_space<vmem>>, vector<2x128xf32>
      %c0_12 = arith.constant 0 : index
      %11 = arith.index_cast %arg9 : i32 to index
      %c0_13 = arith.constant 0 : index
      %12 = vector.load %arg1[%c0_12, %11, %c0_13] : memref<2x8x384xf32, #tpu.memory_space<vmem>>, vector<2x1x384xf32>
      %13 = vector.shape_cast %12 : vector<2x1x384xf32> to vector<2x384xf32>
      %14 = arith.truncf %10 : vector<2x128xf32> to vector<2x128xbf16>
      %c0_14 = arith.constant 0 : index
      %c0_15 = arith.constant 0 : index
      %15 = vector.load %arg5[%c0_14, %c0_15] : memref<128x384xbf16, #tpu.memory_space<vmem>>, vector<128x384xbf16>
      %cst = arith.constant dense<0.000000e+00> : vector<2x384xf32>
      %16 = tpu.matmul %14, %15, %cst {dimension_numbers = #tpu.dot_dimension_numbers<[1], [0], [0], [1], [0, 0, 1, 1], [], []>} : vector<2x128xbf16>, vector<128x384xbf16>, vector<2x384xf32> -> vector<2x384xf32>
      %17 = vector.extract_strided_slice %13 {offsets = [0, 0], sizes = [2, 128], strides = [1, 1]} : vector<2x384xf32> to vector<2x128xf32>
      %18 = vector.extract_strided_slice %16 {offsets = [0, 0], sizes = [2, 128], strides = [1, 1]} : vector<2x384xf32> to vector<2x128xf32>
      %19 = arith.addf %17, %18 : vector<2x128xf32>
      %20 = arith.negf %19 : vector<2x128xf32>
      %21 = math.exp %20 : vector<2x128xf32>
      %cst_16 = arith.constant 1.000000e+00 : f32
      %22 = vector.broadcast %cst_16 : f32 to vector<2x128xf32>
      %23 = arith.addf %22, %21 : vector<2x128xf32>
      %24 = arith.divf %22, %23 : vector<2x128xf32>
      %25 = vector.extract_strided_slice %13 {offsets = [0, 128], sizes = [2, 128], strides = [1, 1]} : vector<2x384xf32> to vector<2x128xf32>
      %26 = vector.extract_strided_slice %16 {offsets = [0, 128], sizes = [2, 128], strides = [1, 1]} : vector<2x384xf32> to vector<2x128xf32>
      %27 = arith.addf %25, %26 : vector<2x128xf32>
      %28 = arith.negf %27 : vector<2x128xf32>
      %29 = math.exp %28 : vector<2x128xf32>
      %cst_17 = arith.constant 1.000000e+00 : f32
      %30 = vector.broadcast %cst_17 : f32 to vector<2x128xf32>
      %31 = arith.addf %30, %29 : vector<2x128xf32>
      %32 = arith.divf %30, %31 : vector<2x128xf32>
      %33 = vector.extract_strided_slice %13 {offsets = [0, 256], sizes = [2, 128], strides = [1, 1]} : vector<2x384xf32> to vector<2x128xf32>
      %34 = vector.extract_strided_slice %16 {offsets = [0, 256], sizes = [2, 128], strides = [1, 1]} : vector<2x384xf32> to vector<2x128xf32>
      %35 = arith.addf %34, %5 : vector<2x128xf32>
      %36 = arith.mulf %24, %35 : vector<2x128xf32>
      %37 = arith.addf %33, %36 : vector<2x128xf32>
      %38 = math.tanh %37 : vector<2x128xf32>
      %cst_18 = arith.constant 1.000000e+00 : f32
      %39 = vector.broadcast %cst_18 : f32 to vector<2x128xf32>
      %40 = arith.subf %39, %32 : vector<2x128xf32>
      %41 = arith.mulf %40, %38 : vector<2x128xf32>
      %42 = arith.mulf %32, %10 : vector<2x128xf32>
      %43 = arith.addf %41, %42 : vector<2x128xf32>
      %c0_19 = arith.constant 0 : index
      %c0_20 = arith.constant 0 : index
      %44 = vector.load %arg6[%c0_19, %c0_20] : memref<2x128xf32, #tpu.memory_space<vmem>>, vector<2x128xf32>
      tpu.vector_store %arg6[%c0_19, %c0_20], %43 {strides = array<i32>} : memref<2x128xf32, #tpu.memory_space<vmem>>, vector<2x128xf32>,
      %c0_21 = arith.constant 0 : index
      %45 = arith.index_cast %arg9 : i32 to index
      %c0_22 = arith.constant 0 : index
      %46 = vector.load %arg7[%c0_21, %45, %c0_22] : memref<2x8x128xf32, #tpu.memory_space<vmem>>, vector<2x1x128xf32>
      %47 = vector.shape_cast %46 : vector<2x1x128xf32> to vector<2x128xf32>
      %48 = vector.shape_cast %43 : vector<2x128xf32> to vector<2x1x128xf32>
      tpu.vector_store %arg7[%c0_21, %45, %c0_22], %48 {strides = array<i32>} : memref<2x8x128xf32, #tpu.memory_space<vmem>>, vector<2x1x128xf32>,
    }
    %c8_i32_3 = arith.constant 8 : i32
    %c0_4 = arith.constant 0 : index
    %c0_5 = arith.constant 0 : index
    %c0_6 = arith.constant 0 : index
    %7 = vector.load %arg7[%c0_4, %c0_5, %c0_6] : memref<2x8x128xf32, #tpu.memory_space<vmem>>, vector<2x8x128xf32>
    %8 = arith.truncf %7 : vector<2x8x128xf32> to vector<2x8x128xbf16>
    %c0_7 = arith.constant 0 : index
    %c0_8 = arith.constant 0 : index
    %c0_9 = arith.constant 0 : index
    %9 = vector.load %arg4[%c0_7, %c0_8, %c0_9] : memref<2x8x128xbf16, #tpu.memory_space<vmem>>, vector<2x8x128xbf16>
    tpu.vector_store %arg4[%c0_7, %c0_8, %c0_9], %8 {strides = array<i32>} : memref<2x8x128xbf16, #tpu.memory_space<vmem>>, vector<2x8x128xbf16>,
    return
  }
  func.func @transform_0(%arg0: i32) -> (i32, i32, i32) {
    %c0_i32 = arith.constant 0 : i32
    %c0_i32_0 = arith.constant 0 : i32
    %c0_i32_1 = arith.constant 0 : i32
    return %c0_i32, %arg0, %c0_i32_0 : i32, i32, i32
  }
  func.func @transform_2(%arg0: i32) -> (i32, i32) {
    %c0_i32 = arith.constant 0 : i32
    %c0_i32_0 = arith.constant 0 : i32
    %c0_i32_1 = arith.constant 0 : i32
    return %c0_i32, %c0_i32_0 : i32, i32
  }
  func.func @transform_3(%arg0: i32) -> (i32, i32, i32) {
    %c0_i32 = arith.constant 0 : i32
    %c0_i32_0 = arith.constant 0 : i32
    %c0_i32_1 = arith.constant 0 : i32
    return %c0_i32, %arg0, %c0_i32_0 : i32, i32, i32
  }
}

module attributes {stable_mosaic.version = 11 : i64} {
  func.func @_matmul_bias_kernel(%arg0: i32, %arg1: i32, %arg2: memref<16x128xbf16, #tpu.memory_space<vmem>>, %arg3: memref<128x128xbf16, #tpu.memory_space<vmem>>, %arg4: memref<1x128xf32, #tpu.memory_space<vmem>>, %arg5: memref<16x128xf32, #tpu.memory_space<vmem>>) attributes {dimension_semantics = [#tpu.dimension_semantics<parallel>, #tpu.dimension_semantics<parallel>], iteration_bounds = array<i64: 1, 1>, scalar_prefetch = 0 : i64, scratch_operands = 0 : i64, tpu.core_type = #tpu.core_type<tc>, window_params = [{transform_indices = @transform_0, window_bounds = array<i64: 16, 128>}, {transform_indices = @transform_1, window_bounds = array<i64: 128, 128>}, {transform_indices = @transform_2, window_bounds = array<i64: 1, 128>}, {transform_indices = @transform_3, window_bounds = array<i64: 16, 128>}]} {
    %c0 = arith.constant 0 : index
    %c0_0 = arith.constant 0 : index
    %0 = vector.load %arg2[%c0, %c0_0] : memref<16x128xbf16, #tpu.memory_space<vmem>>, vector<16x128xbf16>
    %c0_1 = arith.constant 0 : index
    %c0_2 = arith.constant 0 : index
    %1 = vector.load %arg3[%c0_1, %c0_2] : memref<128x128xbf16, #tpu.memory_space<vmem>>, vector<128x128xbf16>
    %cst = arith.constant dense<0.000000e+00> : vector<16x128xf32>
    %2 = tpu.matmul %0, %1, %cst {dimension_numbers = #tpu.dot_dimension_numbers<[1], [0], [0], [1], [0, 0, 1, 1], [], []>} : vector<16x128xbf16>, vector<128x128xbf16>, vector<16x128xf32> -> vector<16x128xf32>
    %c0_3 = arith.constant 0 : index
    %c0_4 = arith.constant 0 : index
    %3 = vector.load %arg4[%c0_3, %c0_4] : memref<1x128xf32, #tpu.memory_space<vmem>>, vector<1x128xf32>
    %4 = vector.broadcast %3 : vector<1x128xf32> to vector<16x128xf32>
    %5 = arith.addf %2, %4 : vector<16x128xf32>
    %c0_5 = arith.constant 0 : index
    %c0_6 = arith.constant 0 : index
    %6 = vector.load %arg5[%c0_5, %c0_6] : memref<16x128xf32, #tpu.memory_space<vmem>>, vector<16x128xf32>
    tpu.vector_store %arg5[%c0_5, %c0_6], %5 {strides = array<i32>} : memref<16x128xf32, #tpu.memory_space<vmem>>, vector<16x128xf32>,
    return
  }
  func.func @transform_0(%arg0: i32, %arg1: i32) -> (i32, i32) {
    %c0_i32 = arith.constant 0 : i32
    %c0_i32_0 = arith.constant 0 : i32
    return %arg0, %c0_i32 : i32, i32
  }
  func.func @transform_1(%arg0: i32, %arg1: i32) -> (i32, i32) {
    %c0_i32 = arith.constant 0 : i32
    %c0_i32_0 = arith.constant 0 : i32
    return %c0_i32, %arg1 : i32, i32
  }
  func.func @transform_2(%arg0: i32, %arg1: i32) -> (i32, i32) {
    %c0_i32 = arith.constant 0 : i32
    %c0_i32_0 = arith.constant 0 : i32
    return %c0_i32, %arg1 : i32, i32
  }
  func.func @transform_3(%arg0: i32, %arg1: i32) -> (i32, i32) {
    %c0_i32 = arith.constant 0 : i32
    return %arg0, %arg1 : i32, i32
  }
}

</mosaic_0001>

<llo_original>
// kernel: auto_regressive_forward.3
$region0: #{auto_regressive_forward.3}
  #allocation0 [shape = 'u32[]', space=smem, size = 0x4, offset = 0x4, fixed_abs, tag = 'smem constant byte address 0x4 - core index']
  #allocation1 [shape = 'u32[144,128]{1,0:T(1,128)}', space=vmem, size = 0x12000, scoped, tag = 'internal scratch']
  %s0 = inlined_call_operand.vmem [shape: f32[16,32], index: 0, kind: input, shape index: {}]
  %s1 = inlined_call_operand.vmem [shape: bf16[32,384], index: 1, kind: input, shape index: {}]
  %s2 = inlined_call_operand.vmem [shape: f32[1,384], index: 2, kind: input, shape index: {}]
  %s3 = inlined_call_operand.vmem [shape: f32[16,384], index: 3, kind: output, shape index: {}]
  %s4 = sld [smem:[#allocation0]]
  $region22: #{auto_regressive_forward.3} parent=0
    _
  %s6 = ssub.s32 1, %s4
  %s7 = scalar_select 0, %s6, %s4
  // Predicated region
  $region2: #{auto_regressive_forward.3} parent=0 // pred_check
    _
  $region3: #{auto_regressive_forward.3} parent=0 // pred_check_branch
    %9 = sbr.rel (0) target = $region5
  $region4: #{auto_regressive_forward.3} parent=0 // pred_region
    _
  $region5: #{auto_regressive_forward.3} parent=0 // pred_fallthru
    _
  // Predicated region
  $region6: #{auto_regressive_forward.3} parent=0 // pred_check
    _
  $region7: #{auto_regressive_forward.3} parent=0 // pred_check_branch
    %11 = sbr.rel (0) target = $region9
  $region8: #{auto_regressive_forward.3} parent=0 // pred_region
    _
  $region9: #{auto_regressive_forward.3} parent=0 // pred_fallthru
    _
  // Predicated region
  $region10: #{auto_regressive_forward.3} parent=0 // pred_check
    _
  $region11: #{auto_regressive_forward.3} parent=0 // pred_check_branch
    %13 = sbr.rel (0) target = $region13
  $region12: #{auto_regressive_forward.3} parent=0 // pred_region
    _
  $region13: #{auto_regressive_forward.3} parent=0 // pred_fallthru
    _
  %v15 = vld [vmem:[%s0] sm:$0xff]
  %v16 = vld [vmem:[%s0 + $0x8] sm:$0xff]
  %v17 = vpack.c.bf16 %v16, %v15
  %v18 = vld [vmem:[%s1] sm:$0xff]
  %v19 = vld [vmem:[%s1 + $0x8] sm:$0xf]
  %v20 = vld [vmem:[%s1 + $0xc] sm:$0xff]
  %v21 = vld [vmem:[%s1 + $0x14] sm:$0xf]
  %v22 = vld [vmem:[%s1 + $0x18] sm:$0xff]
  %v23 = vld [vmem:[%s1 + $0x20] sm:$0xf]
  %v24 = vld [vmem:[%s1 + $0x24] sm:$0xff]
  %v25 = vld [vmem:[%s1 + $0x2c] sm:$0xf]
  %v26 = vld [vmem:[%s2] sm:$0x7]
  %v28 = vlaneseq
  %v29 = vshrl.u32 %v28, 7
  %v30 = vsub.s32 0, %v29
  %v31 = vrot.slane %v26, %v30
  %v32 = vlaneseq
  %v33 = vshrl.u32 %v32, 7
  %v34 = vsub.s32 1, %v33
  %v35 = vrot.slane %v26, %v34
  %v36 = vlaneseq
  %v37 = vshrl.u32 %v36, 7
  %v38 = vsub.s32 2, %v37
  %v39 = vrot.slane %v26, %v38
  %v51 = vunpack.c.l.b16 %v18
  %v52 = vunpack.c.h.b16 %v18
  %v53 = vunpack.c.l.b16 %v19
  %v54 = vunpack.c.l.b16 %v20
  %v55 = vunpack.c.h.b16 %v20
  %v56 = vunpack.c.l.b16 %v21
  %v57 = vunpack.c.l.b16 %v22
  %v58 = vunpack.c.h.b16 %v22
  %v59 = vunpack.c.l.b16 %v23
  %v60 = vunpack.c.l.b16 %v24
  %v61 = vunpack.c.h.b16 %v24
  %v62 = vunpack.c.l.b16 %v25
  %v63 = vpack.c.b16 %v54, %v51
  %v64 = vpack.c.b16 %v55, %v52
  %v65 = vpack.c.b16 %v56, %v53
  %v66 = vpack.c.b16 %v60, %v57
  %v67 = vpack.c.b16 %v61, %v58
  %v68 = vpack.c.b16 %v62, %v59
  %vm75 = vcmask 261120
  %v77 = vsel %vm75, %v17, 0
  %79 = vmatprep.subr.bf16.mxu0 0
  %80 = vmatpush1.bf16.msra.mxu0 0
  %81 = vmatprep.subr.bf16.mxu0 0
  %82 = vmatpush1.bf16.msra.mxu0 0
  %83 = vmatprep.subr.bf16.mxu0 0
  %84 = vmatpush1.bf16.msra.mxu0 0
  %85 = vmatprep.subr.bf16.mxu0 0
  %86 = vmatpush1.bf16.msra.mxu0 0
  %87 = vmatprep.subr.bf16.mxu0 0
  %88 = vmatpush1.bf16.msra.mxu0 0
  %89 = vmatprep.subr.bf16.mxu0 0
  %90 = vmatpush1.bf16.msra.mxu0 0
  %91 = vmatprep.subr.bf16.mxu0 %v67
  %92 = vmatpush1.bf16.msra.mxu0 %v66
  %93 = vmatprep.subr.bf16.mxu0 %v64
  %94 = vmatpush1.bf16.msra.mxu0 %v63
  %95 = vmatprep.subr.bf16.mxu0 0
  %96 = vmatpush2.bf16.msra.mxu0 0
  %97 = vmatprep.subr.bf16.mxu0 0
  %98 = vmatpush2.bf16.msra.mxu0 0
  %99 = vmatprep.subr.bf16.mxu0 0
  %100 = vmatpush2.bf16.msra.mxu0 0
  %101 = vmatprep.subr.bf16.mxu0 0
  %102 = vmatpush2.bf16.msra.mxu0 0
  %103 = vmatprep.subr.bf16.mxu0 0
  %104 = vmatpush2.bf16.msra.mxu0 0
  %105 = vmatprep.subr.bf16.mxu0 0
  %106 = vmatpush2.bf16.msra.mxu0 0
  %107 = vmatprep.subr.bf16.mxu0 0
  %108 = vmatpush2.bf16.msra.mxu0 0
  %109 = vmatprep.subr.bf16.mxu0 0
  %110 = vmatpush2.bf16.msra.mxu0 0
  %111 = vmatprep.mubr.bf16.mxu0 0
  %112 = vmatmul.mubr.bf16.gmra.mxu0 %v77
  %v113 = vpop.f32.mrf.mxu0
  %v114 = vadd.f32 %v31, %v113
  %v115 = vpop.f32.mrf.mxu0
  %v116 = vadd.f32 %v35, %v115
  %v117 = vpop.f32.mrf.mxu0
  %v118 = vadd.f32 %v31, %v117
  %v119 = vpop.f32.mrf.mxu0
  %v120 = vadd.f32 %v35, %v119
  %121 = vdwg.mxu0
  %122 = vmatprep.subr.bf16.mxu0 0
  %123 = vmatpush1.bf16.msra.mxu0 0
  %124 = vmatprep.subr.bf16.mxu0 0
  %125 = vmatpush1.bf16.msra.mxu0 0
  %126 = vmatprep.subr.bf16.mxu0 0
  %127 = vmatpush1.bf16.msra.mxu0 0
  %128 = vmatprep.subr.bf16.mxu0 0
  %129 = vmatpush1.bf16.msra.mxu0 0
  %130 = vmatprep.subr.bf16.mxu0 0
  %131 = vmatpush1.bf16.msra.mxu0 0
  %132 = vmatprep.subr.bf16.mxu0 0
  %133 = vmatpush1.bf16.msra.mxu0 0
  %134 = vmatprep.subr.bf16.mxu0 0
  %135 = vmatpush1.bf16.msra.mxu0 %v68
  %136 = vmatprep.subr.bf16.mxu0 0
  %137 = vmatpush1.bf16.msra.mxu0 %v65
  %138 = vmatprep.subr.bf16.mxu0 0
  %139 = vmatpush2.bf16.msra.mxu0 0
  %140 = vmatprep.subr.bf16.mxu0 0
  %141 = vmatpush2.bf16.msra.mxu0 0
  %142 = vmatprep.subr.bf16.mxu0 0
  %143 = vmatpush2.bf16.msra.mxu0 0
  %144 = vmatprep.subr.bf16.mxu0 0
  %145 = vmatpush2.bf16.msra.mxu0 0
  %146 = vmatprep.subr.bf16.mxu0 0
  %147 = vmatpush2.bf16.msra.mxu0 0
  %148 = vmatprep.subr.bf16.mxu0 0
  %149 = vmatpush2.bf16.msra.mxu0 0
  %150 = vmatprep.subr.bf16.mxu0 0
  %151 = vmatpush2.bf16.msra.mxu0 0
  %152 = vmatprep.subr.bf16.mxu0 0
  %153 = vmatpush2.bf16.msra.mxu0 0
  %154 = vmatprep.mubr.bf16.mxu0 0
  %155 = vmatmul.mubr.bf16.gmra.mxu0 %v77
  %v156 = vpop.f32.mrf.mxu0
  %v157 = vadd.f32 %v39, %v156
  %v158 = vpop.f32.mrf.mxu0
  %v159 = vpop.f32.mrf.mxu0
  %v160 = vadd.f32 %v39, %v159
  %v161 = vpop.f32.mrf.mxu0
  %162 = vdwg.mxu0
  %163 = vst [vmem:[%s3] sm:$0xff] %v114
  %164 = vst [vmem:[%s3 + $0x8] sm:$0xff] %v116
  %165 = vst [vmem:[%s3 + $0x10] sm:$0xff] %v157
  %166 = vst [vmem:[%s3 + $0x18] sm:$0xff] %v118
  %167 = vst [vmem:[%s3 + $0x20] sm:$0xff] %v120
  %168 = vst [vmem:[%s3 + $0x28] sm:$0xff] %v160
  // Predicated region
  $region14: #{auto_regressive_forward.3} parent=0 // pred_check
    _
  $region15: #{auto_regressive_forward.3} parent=0 // pred_check_branch
    %170 = sbr.rel (0) target = $region17
  $region16: #{auto_regressive_forward.3} parent=0 // pred_region
    _
  $region17: #{auto_regressive_forward.3} parent=0 // pred_fallthru
    _
  // Predicated region
  $region18: #{auto_regressive_forward.3} parent=0 // pred_check
    _
  $region19: #{auto_regressive_forward.3} parent=0 // pred_check_branch
    %172 = sbr.rel (0) target = $region21
  $region20: #{auto_regressive_forward.3} parent=0 // pred_region
    _
  $region21: #{auto_regressive_forward.3} parent=0 // pred_fallthru
    _

// kernel: auto_regressive_forward.5
$region0: #{auto_regressive_forward.5}
  #allocation0 [shape = 'u32[]', space=smem, size = 0x4, offset = 0x4, fixed_abs, tag = 'smem constant byte address 0x4 - core index']
  #allocation1 [shape = 'u32[144,128]{1,0:T(1,128)}', space=vmem, size = 0x12000, scoped, tag = 'internal scratch']
  %s0 = inlined_call_operand.vmem [shape: bf16[16,128], index: 0, kind: input, shape index: {}]
  %s1 = inlined_call_operand.vmem [shape: bf16[128,128], index: 1, kind: input, shape index: {}]
  %s2 = inlined_call_operand.vmem [shape: f32[1,128], index: 2, kind: input, shape index: {}]
  %s3 = inlined_call_operand.vmem [shape: f32[16,128], index: 3, kind: output, shape index: {}]
  %s4 = sld [smem:[#allocation0]]
  $region22: #{auto_regressive_forward.5} parent=0
    _
  %s6 = ssub.s32 1, %s4
  %s7 = scalar_select 0, %s6, %s4
  // Predicated region
  $region2: #{auto_regressive_forward.5} parent=0 // pred_check
    _
  $region3: #{auto_regressive_forward.5} parent=0 // pred_check_branch
    %9 = sbr.rel (0) target = $region5
  $region4: #{auto_regressive_forward.5} parent=0 // pred_region
    _
  $region5: #{auto_regressive_forward.5} parent=0 // pred_fallthru
    _
  // Predicated region
  $region6: #{auto_regressive_forward.5} parent=0 // pred_check
    _
  $region7: #{auto_regressive_forward.5} parent=0 // pred_check_branch
    %11 = sbr.rel (0) target = $region9
  $region8: #{auto_regressive_forward.5} parent=0 // pred_region
    _
  $region9: #{auto_regressive_forward.5} parent=0 // pred_fallthru
    _
  // Predicated region
  $region10: #{auto_regressive_forward.5} parent=0 // pred_check
    _
  $region11: #{auto_regressive_forward.5} parent=0 // pred_check_branch
    %13 = sbr.rel (0) target = $region13
  $region12: #{auto_regressive_forward.5} parent=0 // pred_region
    _
  $region13: #{auto_regressive_forward.5} parent=0 // pred_fallthru
    _
  %v15 = vld [vmem:[%s0] sm:$0xf]
  %v16 = vld [vmem:[%s0 + $0x4] sm:$0xf]
  %v17 = vld [vmem:[%s1] sm:$0xf]
  %v18 = vld [vmem:[%s1 + $0x4] sm:$0xf]
  %v19 = vld [vmem:[%s1 + $0x8] sm:$0xf]
  %v20 = vld [vmem:[%s1 + $0xc] sm:$0xf]
  %v21 = vld [vmem:[%s1 + $0x10] sm:$0xf]
  %v22 = vld [vmem:[%s1 + $0x14] sm:$0xf]
  %v23 = vld [vmem:[%s1 + $0x18] sm:$0xf]
  %v24 = vld [vmem:[%s1 + $0x1c] sm:$0xf]
  %v25 = vld [vmem:[%s1 + $0x20] sm:$0xf]
  %v26 = vld [vmem:[%s1 + $0x24] sm:$0xf]
  %v27 = vld [vmem:[%s1 + $0x28] sm:$0xf]
  %v28 = vld [vmem:[%s1 + $0x2c] sm:$0xf]
  %v29 = vld [vmem:[%s1 + $0x30] sm:$0xf]
  %v30 = vld [vmem:[%s1 + $0x34] sm:$0xf]
  %v31 = vld [vmem:[%s1 + $0x38] sm:$0xf]
  %v32 = vld [vmem:[%s1 + $0x3c] sm:$0xf]
  %v33 = vld [vmem:[%s2] sm:$0x1]
  %v35 = vlaneseq
  %v36 = vshrl.u32 %v35, 7
  %v37 = vsub.s32 0, %v36
  %v38 = vrot.slane %v33, %v37
  %v42 = vunpack.c.l.b16 %v15
  %v43 = vunpack.c.l.b16 %v16
  %v44 = vpack.c.b16 %v43, %v42
  %v62 = vunpack.c.l.b16 %v17
  %v63 = vunpack.c.l.b16 %v18
  %v64 = vunpack.c.l.b16 %v19
  %v65 = vunpack.c.l.b16 %v20
  %v66 = vunpack.c.l.b16 %v21
  %v67 = vunpack.c.l.b16 %v22
  %v68 = vunpack.c.l.b16 %v23
  %v69 = vunpack.c.l.b16 %v24
  %v70 = vunpack.c.l.b16 %v25
  %v71 = vunpack.c.l.b16 %v26
  %v72 = vunpack.c.l.b16 %v27
  %v73 = vunpack.c.l.b16 %v28
  %v74 = vunpack.c.l.b16 %v29
  %v75 = vunpack.c.l.b16 %v30
  %v76 = vunpack.c.l.b16 %v31
  %v77 = vunpack.c.l.b16 %v32
  %v78 = vpack.c.b16 %v63, %v62
  %v79 = vpack.c.b16 %v65, %v64
  %v80 = vpack.c.b16 %v67, %v66
  %v81 = vpack.c.b16 %v69, %v68
  %v82 = vpack.c.b16 %v71, %v70
  %v83 = vpack.c.b16 %v73, %v72
  %v84 = vpack.c.b16 %v75, %v74
  %v85 = vpack.c.b16 %v77, %v76
  %94 = vmatprep.subr.bf16.mxu0 0
  %95 = vmatpush1.bf16.msra.mxu0 %v85
  %96 = vmatprep.subr.bf16.mxu0 0
  %97 = vmatpush1.bf16.msra.mxu0 %v84
  %98 = vmatprep.subr.bf16.mxu0 0
  %99 = vmatpush1.bf16.msra.mxu0 %v83
  %100 = vmatprep.subr.bf16.mxu0 0
  %101 = vmatpush1.bf16.msra.mxu0 %v82
  %102 = vmatprep.subr.bf16.mxu0 0
  %103 = vmatpush1.bf16.msra.mxu0 %v81
  %104 = vmatprep.subr.bf16.mxu0 0
  %105 = vmatpush1.bf16.msra.mxu0 %v80
  %106 = vmatprep.subr.bf16.mxu0 0
  %107 = vmatpush1.bf16.msra.mxu0 %v79
  %108 = vmatprep.subr.bf16.mxu0 0
  %109 = vmatpush1.bf16.msra.mxu0 %v78
  %110 = vmatprep.subr.bf16.mxu0 0
  %111 = vmatpush2.bf16.msra.mxu0 0
  %112 = vmatprep.subr.bf16.mxu0 0
  %113 = vmatpush2.bf16.msra.mxu0 0
  %114 = vmatprep.subr.bf16.mxu0 0
  %115 = vmatpush2.bf16.msra.mxu0 0
  %116 = vmatprep.subr.bf16.mxu0 0
  %117 = vmatpush2.bf16.msra.mxu0 0
  %118 = vmatprep.subr.bf16.mxu0 0
  %119 = vmatpush2.bf16.msra.mxu0 0
  %120 = vmatprep.subr.bf16.mxu0 0
  %121 = vmatpush2.bf16.msra.mxu0 0
  %122 = vmatprep.subr.bf16.mxu0 0
  %123 = vmatpush2.bf16.msra.mxu0 0
  %124 = vmatprep.subr.bf16.mxu0 0
  %125 = vmatpush2.bf16.msra.mxu0 0
  %126 = vmatprep.mubr.bf16.mxu0 0
  %127 = vmatmul.mubr.bf16.gmra.mxu0 %v44
  %v128 = vpop.f32.mrf.mxu0
  %v129 = vadd.f32 %v38, %v128
  %v130 = vpop.f32.mrf.mxu0
  %v131 = vpop.f32.mrf.mxu0
  %v132 = vadd.f32 %v38, %v131
  %v133 = vpop.f32.mrf.mxu0
  %134 = vdwg.mxu0
  %135 = vst [vmem:[%s3] sm:$0xff] %v129
  %136 = vst [vmem:[%s3 + $0x8] sm:$0xff] %v132
  // Predicated region
  $region14: #{auto_regressive_forward.5} parent=0 // pred_check
    _
  $region15: #{auto_regressive_forward.5} parent=0 // pred_check_branch
    %138 = sbr.rel (0) target = $region17
  $region16: #{auto_regressive_forward.5} parent=0 // pred_region
    _
  $region17: #{auto_regressive_forward.5} parent=0 // pred_fallthru
    _
  // Predicated region
  $region18: #{auto_regressive_forward.5} parent=0 // pred_check
    _
  $region19: #{auto_regressive_forward.5} parent=0 // pred_check_branch
    %140 = sbr.rel (0) target = $region21
  $region20: #{auto_regressive_forward.5} parent=0 // pred_region
    _
  $region21: #{auto_regressive_forward.5} parent=0 // pred_fallthru
    _

// kernel: auto_regressive_forward.4
$region0: #{auto_regressive_forward.4}
  #allocation0 [shape = 'u32[]', space=smem, size = 0x4, offset = 0x4, fixed_abs, tag = 'smem constant byte address 0x4 - core index']
  #allocation1 [shape = 'u32[144,128]{1,0:T(1,128)}', space=vmem, size = 0x12000, scoped, tag = 'internal scratch']
  #allocation2 [shape = 'bf16[128,384]{1,0:T(8,128)(2,1)}', space=vmem, size = 0x18000, scoped, tag = 'scratch operand']
  #allocation3 [shape = 'f32[2,128]{1,0:T(2,128)}', space=vmem, size = 0x400, scoped, tag = 'scratch operand']
  #allocation4 [shape = 'f32[2,8,128]{2,1,0:T(8,128)}', space=vmem, size = 0x2000, scoped, tag = 'scratch operand']
  #allocation5 [shape = 's32[1]{0}', space=sflag, size = 0x4, scoped, tag = 'scratch operand']
  #allocation6 [shape = 's32[]', space=sflag, size = 0x4, offset = 0, fixed_abs, tag = 'sflag constant byte address 0x0 - dummy sync flag']
  %s0 = inlined_call_operand.vmem [shape: f32[2,8,384], index: 0, kind: input, shape index: {}]
  %s1 = inlined_call_operand.vmem [shape: bf16[128,384], index: 1, kind: input, shape index: {}]
  %s2 = inlined_call_operand.vmem [shape: f32[1,128], index: 2, kind: input, shape index: {}]
  %s3 = inlined_call_operand.vmem [shape: bf16[2,8,128], index: 3, kind: output, shape index: {}]
  %s4 = sld [smem:[#allocation0]]
  $region63: #{auto_regressive_forward.4} parent=0
    _
  %s6 = ssub.s32 1, %s4
  %s7 = scalar_select 0, %s6, %s4
  // Predicated region
  $region2: #{auto_regressive_forward.4} parent=0 // pred_check
    _
  $region3: #{auto_regressive_forward.4} parent=0 // pred_check_branch
    %9 = sbr.rel (0) target = $region5
  $region4: #{auto_regressive_forward.4} parent=0 // pred_region
    _
  $region5: #{auto_regressive_forward.4} parent=0 // pred_fallthru
    _
  // Predicated region
  $region6: #{auto_regressive_forward.4} parent=0 // pred_check
    _
  $region7: #{auto_regressive_forward.4} parent=0 // pred_check_branch
    %11 = sbr.rel (0) target = $region9
  $region8: #{auto_regressive_forward.4} parent=0 // pred_region
    _
  $region9: #{auto_regressive_forward.4} parent=0 // pred_fallthru
    _
  %p13 = scmp.eq.s32.totalorder 0, 0
  // Predicated region
  $region10: #{auto_regressive_forward.4} parent=0 // pred_check
    %p14 = pneg %p13
  $region11: #{auto_regressive_forward.4} parent=0 // pred_check_branch
    %16 = sbr.rel (%p14) target = $region13
  $region12: #{auto_regressive_forward.4} parent=0 // pred_region
    %p18 = scmp.lt.u32.totalorder 192, 8
    %p19 = pneg %p18
    // Predicated region
    $region14: #{auto_regressive_forward.4} parent=12 // pred_check
      _
    $region15: #{auto_regressive_forward.4} parent=12 // pred_check_branch
      %21 = sbr.rel (%p18) target = $region17
    $region16: #{auto_regressive_forward.4} parent=12 // pred_region
      %s37 = sand.u32 192, 7
      %p38 = scmp.eq.s32.totalorder %s37, 0
      // Predicated region
      $region29: #{auto_regressive_forward.4} parent=16 // pred_check
        %p39 = pneg %p38
      $region30: #{auto_regressive_forward.4} parent=16 // pred_check_branch
        %41 = sbr.rel (%p39) target = $region32
      $region31: #{auto_regressive_forward.4} parent=16 // pred_region
        loop: start=0, step=1, limit=1
        $region33: #{auto_regressive_forward.4} parent=31 // loop_pre_header
          _
        $region34: #{auto_regressive_forward.4} parent=31 // loop_header
          %s43 = sphi 0, %s47
          %p44 = scmp.ge.s32.totalorder %s43, 1
          %s48 = sphi %s1, %s1
          %s49 = sphi [#allocation2], [#allocation2]
        $region35: #{auto_regressive_forward.4} parent=31 // loop_header_branch
          %46 = sbr.rel (%p44) target = $region39
        $region36: #{auto_regressive_forward.4} parent=31 // loop_body
          %v50 = vld [vmem:[%s48] sm:$0xff]
          %51 = vst [vmem:[%s49] sm:$0xff] %v50
          %v52 = vld [vmem:[%s48 + $0x8] sm:$0xff]
          %53 = vst [vmem:[%s49 + $0x8] sm:$0xff] %v52
          %v54 = vld [vmem:[%s48 + $0x10] sm:$0xff]
          %55 = vst [vmem:[%s49 + $0x10] sm:$0xff] %v54
          %v56 = vld [vmem:[%s48 + $0x18] sm:$0xff]
          %57 = vst [vmem:[%s49 + $0x18] sm:$0xff] %v56
          %v58 = vld [vmem:[%s48 + $0x20] sm:$0xff]
          %59 = vst [vmem:[%s49 + $0x20] sm:$0xff] %v58
          %v60 = vld [vmem:[%s48 + $0x28] sm:$0xff]
          %61 = vst [vmem:[%s49 + $0x28] sm:$0xff] %v60
          %v62 = vld [vmem:[%s48 + $0x30] sm:$0xff]
          %63 = vst [vmem:[%s49 + $0x30] sm:$0xff] %v62
          %v64 = vld [vmem:[%s48 + $0x38] sm:$0xff]
          %65 = vst [vmem:[%s49 + $0x38] sm:$0xff] %v64
          %v66 = vld [vmem:[%s48 + $0x40] sm:$0xff]
          %67 = vst [vmem:[%s49 + $0x40] sm:$0xff] %v66
          %v68 = vld [vmem:[%s48 + $0x48] sm:$0xff]
          %69 = vst [vmem:[%s49 + $0x48] sm:$0xff] %v68
          %v70 = vld [vmem:[%s48 + $0x50] sm:$0xff]
          %71 = vst [vmem:[%s49 + $0x50] sm:$0xff] %v70
          %v72 = vld [vmem:[%s48 + $0x58] sm:$0xff]
          %73 = vst [vmem:[%s49 + $0x58] sm:$0xff] %v72
          %v74 = vld [vmem:[%s48 + $0x60] sm:$0xff]
          %75 = vst [vmem:[%s49 + $0x60] sm:$0xff] %v74
          %v76 = vld [vmem:[%s48 + $0x68] sm:$0xff]
          %77 = vst [vmem:[%s49 + $0x68] sm:$0xff] %v76
          %v78 = vld [vmem:[%s48 + $0x70] sm:$0xff]
          %79 = vst [vmem:[%s49 + $0x70] sm:$0xff] %v78
          %v80 = vld [vmem:[%s48 + $0x78] sm:$0xff]
          %81 = vst [vmem:[%s49 + $0x78] sm:$0xff] %v80
          %v82 = vld [vmem:[%s48 + $0x80] sm:$0xff]
          %83 = vst [vmem:[%s49 + $0x80] sm:$0xff] %v82
          %v84 = vld [vmem:[%s48 + $0x88] sm:$0xff]
          %85 = vst [vmem:[%s49 + $0x88] sm:$0xff] %v84
          %v86 = vld [vmem:[%s48 + $0x90] sm:$0xff]
          %87 = vst [vmem:[%s49 + $0x90] sm:$0xff] %v86
          %v88 = vld [vmem:[%s48 + $0x98] sm:$0xff]
          %89 = vst [vmem:[%s49 + $0x98] sm:$0xff] %v88
          %v90 = vld [vmem:[%s48 + $0xa0] sm:$0xff]
          %91 = vst [vmem:[%s49 + $0xa0] sm:$0xff] %v90
          %v92 = vld [vmem:[%s48 + $0xa8] sm:$0xff]
          %93 = vst [vmem:[%s49 + $0xa8] sm:$0xff] %v92
          %v94 = vld [vmem:[%s48 + $0xb0] sm:$0xff]
          %95 = vst [vmem:[%s49 + $0xb0] sm:$0xff] %v94
          %v96 = vld [vmem:[%s48 + $0xb8] sm:$0xff]
          %97 = vst [vmem:[%s49 + $0xb8] sm:$0xff] %v96
        $region37: #{auto_regressive_forward.4} parent=31 // loop_footer
          %s47 = sadd.s32 1, %s43
        $region38: #{auto_regressive_forward.4} parent=31 // loop_footer_branch
          %42 = sbr.rel target = $region34
        $region39: #{auto_regressive_forward.4} parent=31 // loop_exit
          _
      $region32: #{auto_regressive_forward.4} parent=16 // pred_fallthru
        _
      %p98 = pneg %p38
      // Predicated region
      $region40: #{auto_regressive_forward.4} parent=16 // pred_check
        _
      $region41: #{auto_regressive_forward.4} parent=16 // pred_check_branch
        %100 = sbr.rel (%p38) target = $region43
      $region42: #{auto_regressive_forward.4} parent=16 // pred_region
        %s101 = sand.u32 192, 7
      $region43: #{auto_regressive_forward.4} parent=16 // pred_fallthru
        _
    $region17: #{auto_regressive_forward.4} parent=12 // pred_fallthru
      _
    // Predicated region
    $region18: #{auto_regressive_forward.4} parent=12 // pred_check
      %p22 = pneg %p18
    $region19: #{auto_regressive_forward.4} parent=12 // pred_check_branch
      %24 = sbr.rel (%p22) target = $region21
    $region20: #{auto_regressive_forward.4} parent=12 // pred_region
      %s25 = sshll.u32 1, 192
      %s26 = ssub.s32 %s25, 1
      loop: start=0, step=1, limit=1
      $region22: #{auto_regressive_forward.4} parent=20 // loop_pre_header
        _
      $region23: #{auto_regressive_forward.4} parent=20 // loop_header
        %s28 = sphi 0, %s32
        %p29 = scmp.ge.s32.totalorder %s28, 1
        %s33 = sphi %s1, %s1
        %s34 = sphi [#allocation2], [#allocation2]
      $region24: #{auto_regressive_forward.4} parent=20 // loop_header_branch
        %31 = sbr.rel (%p29) target = $region28
      $region25: #{auto_regressive_forward.4} parent=20 // loop_body
        %v35 = vld [vmem:[%s33] sm:%s26]
        %36 = vst [vmem:[%s34] sm:%s26] %v35
      $region26: #{auto_regressive_forward.4} parent=20 // loop_footer
        %s32 = sadd.s32 1, %s28
      $region27: #{auto_regressive_forward.4} parent=20 // loop_footer_branch
        %27 = sbr.rel target = $region23
      $region28: #{auto_regressive_forward.4} parent=20 // loop_exit
        _
    $region21: #{auto_regressive_forward.4} parent=12 // pred_fallthru
      _
    // Predicated region
    $region44: #{auto_regressive_forward.4} parent=12 // pred_check
      _
    $region45: #{auto_regressive_forward.4} parent=12 // pred_check_branch
      %104 = sbr.rel (0) target = $region47
    $region46: #{auto_regressive_forward.4} parent=12 // pred_region
      %105 = vsyncadd [#allocation5], 3072
    $region47: #{auto_regressive_forward.4} parent=12 // pred_fallthru
      _
    %s106 = smul.u32 4, 16
    %s107 = smul.u32 %s106, 3
    %s108 = sshll.u32 %s107, 4
    %109 = dma.done [#allocation5], %s108
    %110 = vst [vmem:[#allocation3] sm:$0x3] 0.0
  $region13: #{auto_regressive_forward.4} parent=0 // pred_fallthru
    _
  %v111 = vld [vmem:[%s2] sm:$0x1]
  %v113 = vlaneseq
  %v114 = vshrl.u32 %v113, 7
  %v115 = vsub.s32 0, %v114
  %v116 = vrot.slane %v111, %v115
  loop: start=0, step=1, limit=8
  $region48: #{auto_regressive_forward.4} parent=0 // loop_pre_header
    _
  $region49: #{auto_regressive_forward.4} parent=0 // loop_header
    %s119 = sphi 0, %s123
    %p120 = scmp.ge.s32.totalorder %s119, 8
  $region50: #{auto_regressive_forward.4} parent=0 // loop_header_branch
    %122 = sbr.rel (%p120) target = $region54
  $region51: #{auto_regressive_forward.4} parent=0 // loop_body
    %v124 = vld [vmem:[#allocation3] sm:$0x3]
    %s125 = sshra.s32 %s119, 3
    %s126 = sand.u32 %s119, 7
    %s127 = sshra.s32 %s119, 3
    %s128 = sand.u32 %s119, 7
    %s129 = smul.u32 %s125, 3
    %s130 = smul.u32 %s129, 8
    %s131 = sadd.s32 %s130, %s128
    %s132 = scalar_lea.vmem %s0, %s131
    %v133 = vld [vmem:[%s132] ss:$8 sm:$0x7]
    %s134 = sadd.s32 24, %s131
    %s135 = scalar_lea.vmem %s0, %s134
    %v136 = vld [vmem:[%s135] ss:$8 sm:$0x7]
    %v137 = vpack.c.bf16 %v124, %v124
    %v138 = vld [vmem:[#allocation2] sm:$0xff]
    %v139 = vld [vmem:[#allocation2 + $0x8] sm:$0xf]
    %v140 = vld [vmem:[#allocation2 + $0xc] sm:$0xff]
    %v141 = vld [vmem:[#allocation2 + $0x14] sm:$0xf]
    %v142 = vld [vmem:[#allocation2 + $0x18] sm:$0xff]
    %v143 = vld [vmem:[#allocation2 + $0x20] sm:$0xf]
    %v144 = vld [vmem:[#allocation2 + $0x24] sm:$0xff]
    %v145 = vld [vmem:[#allocation2 + $0x2c] sm:$0xf]
    %v146 = vld [vmem:[#allocation2 + $0x30] sm:$0xff]
    %v147 = vld [vmem:[#allocation2 + $0x38] sm:$0xf]
    %v148 = vld [vmem:[#allocation2 + $0x3c] sm:$0xff]
    %v149 = vld [vmem:[#allocation2 + $0x44] sm:$0xf]
    %v150 = vld [vmem:[#allocation2 + $0x48] sm:$0xff]
    %v151 = vld [vmem:[#allocation2 + $0x50] sm:$0xf]
    %v152 = vld [vmem:[#allocation2 + $0x54] sm:$0xff]
    %v153 = vld [vmem:[#allocation2 + $0x5c] sm:$0xf]
    %v154 = vld [vmem:[#allocation2 + $0x60] sm:$0xff]
    %v155 = vld [vmem:[#allocation2 + $0x68] sm:$0xf]
    %v156 = vld [vmem:[#allocation2 + $0x6c] sm:$0xff]
    %v157 = vld [vmem:[#allocation2 + $0x74] sm:$0xf]
    %v158 = vld [vmem:[#allocation2 + $0x78] sm:$0xff]
    %v159 = vld [vmem:[#allocation2 + $0x80] sm:$0xf]
    %v160 = vld [vmem:[#allocation2 + $0x84] sm:$0xff]
    %v161 = vld [vmem:[#allocation2 + $0x8c] sm:$0xf]
    %v162 = vld [vmem:[#allocation2 + $0x90] sm:$0xff]
    %v163 = vld [vmem:[#allocation2 + $0x98] sm:$0xf]
    %v164 = vld [vmem:[#allocation2 + $0x9c] sm:$0xff]
    %v165 = vld [vmem:[#allocation2 + $0xa4] sm:$0xf]
    %v166 = vld [vmem:[#allocation2 + $0xa8] sm:$0xff]
    %v167 = vld [vmem:[#allocation2 + $0xb0] sm:$0xf]
    %v168 = vld [vmem:[#allocation2 + $0xb4] sm:$0xff]
    %v169 = vld [vmem:[#allocation2 + $0xbc] sm:$0xf]
    %v202 = vunpack.c.l.b16 %v138
    %v203 = vunpack.c.h.b16 %v138
    %v204 = vunpack.c.l.b16 %v139
    %v205 = vunpack.c.l.b16 %v140
    %v206 = vunpack.c.h.b16 %v140
    %v207 = vunpack.c.l.b16 %v141
    %v208 = vunpack.c.l.b16 %v142
    %v209 = vunpack.c.h.b16 %v142
    %v210 = vunpack.c.l.b16 %v143
    %v211 = vunpack.c.l.b16 %v144
    %v212 = vunpack.c.h.b16 %v144
    %v213 = vunpack.c.l.b16 %v145
    %v214 = vunpack.c.l.b16 %v146
    %v215 = vunpack.c.h.b16 %v146
    %v216 = vunpack.c.l.b16 %v147
    %v217 = vunpack.c.l.b16 %v148
    %v218 = vunpack.c.h.b16 %v148
    %v219 = vunpack.c.l.b16 %v149
    %v220 = vunpack.c.l.b16 %v150
    %v221 = vunpack.c.h.b16 %v150
    %v222 = vunpack.c.l.b16 %v151
    %v223 = vunpack.c.l.b16 %v152
    %v224 = vunpack.c.h.b16 %v152
    %v225 = vunpack.c.l.b16 %v153
    %v226 = vunpack.c.l.b16 %v154
    %v227 = vunpack.c.h.b16 %v154
    %v228 = vunpack.c.l.b16 %v155
    %v229 = vunpack.c.l.b16 %v156
    %v230 = vunpack.c.h.b16 %v156
    %v231 = vunpack.c.l.b16 %v157
    %v232 = vunpack.c.l.b16 %v158
    %v233 = vunpack.c.h.b16 %v158
    %v234 = vunpack.c.l.b16 %v159
    %v235 = vunpack.c.l.b16 %v160
    %v236 = vunpack.c.h.b16 %v160
    %v237 = vunpack.c.l.b16 %v161
    %v238 = vunpack.c.l.b16 %v162
    %v239 = vunpack.c.h.b16 %v162
    %v240 = vunpack.c.l.b16 %v163
    %v241 = vunpack.c.l.b16 %v164
    %v242 = vunpack.c.h.b16 %v164
    %v243 = vunpack.c.l.b16 %v165
    %v244 = vunpack.c.l.b16 %v166
    %v245 = vunpack.c.h.b16 %v166
    %v246 = vunpack.c.l.b16 %v167
    %v247 = vunpack.c.l.b16 %v168
    %v248 = vunpack.c.h.b16 %v168
    %v249 = vunpack.c.l.b16 %v169
    %v250 = vpack.c.b16 %v205, %v202
    %v251 = vpack.c.b16 %v206, %v203
    %v252 = vpack.c.b16 %v207, %v204
    %v253 = vpack.c.b16 %v211, %v208
    %v254 = vpack.c.b16 %v212, %v209
    %v255 = vpack.c.b16 %v213, %v210
    %v256 = vpack.c.b16 %v217, %v214
    %v257 = vpack.c.b16 %v218, %v215
    %v258 = vpack.c.b16 %v219, %v216
    %v259 = vpack.c.b16 %v223, %v220
    %v260 = vpack.c.b16 %v224, %v221
    %v261 = vpack.c.b16 %v225, %v222
    %v262 = vpack.c.b16 %v229, %v226
    %v263 = vpack.c.b16 %v230, %v227
    %v264 = vpack.c.b16 %v231, %v228
    %v265 = vpack.c.b16 %v235, %v232
    %v266 = vpack.c.b16 %v236, %v233
    %v267 = vpack.c.b16 %v237, %v234
    %v268 = vpack.c.b16 %v241, %v238
    %v269 = vpack.c.b16 %v242, %v239
    %v270 = vpack.c.b16 %v243, %v240
    %v271 = vpack.c.b16 %v247, %v244
    %v272 = vpack.c.b16 %v248, %v245
    %v273 = vpack.c.b16 %v249, %v246
    %298 = vmatprep.subr.bf16.mxu0 %v272
    %299 = vmatpush1.bf16.msra.mxu0 %v271
    %300 = vmatprep.subr.bf16.mxu0 %v269
    %301 = vmatpush1.bf16.msra.mxu0 %v268
    %302 = vmatprep.subr.bf16.mxu0 %v266
    %303 = vmatpush1.bf16.msra.mxu0 %v265
    %304 = vmatprep.subr.bf16.mxu0 %v263
    %305 = vmatpush1.bf16.msra.mxu0 %v262
    %306 = vmatprep.subr.bf16.mxu0 %v260
    %307 = vmatpush1.bf16.msra.mxu0 %v259
    %308 = vmatprep.subr.bf16.mxu0 %v257
    %309 = vmatpush1.bf16.msra.mxu0 %v256
    %310 = vmatprep.subr.bf16.mxu0 %v254
    %311 = vmatpush1.bf16.msra.mxu0 %v253
    %312 = vmatprep.subr.bf16.mxu0 %v251
    %313 = vmatpush1.bf16.msra.mxu0 %v250
    %314 = vmatprep.subr.bf16.mxu0 0
    %315 = vmatpush2.bf16.msra.mxu0 0
    %316 = vmatprep.subr.bf16.mxu0 0
    %317 = vmatpush2.bf16.msra.mxu0 0
    %318 = vmatprep.subr.bf16.mxu0 0
    %319 = vmatpush2.bf16.msra.mxu0 0
    %320 = vmatprep.subr.bf16.mxu0 0
    %321 = vmatpush2.bf16.msra.mxu0 0
    %322 = vmatprep.subr.bf16.mxu0 0
    %323 = vmatpush2.bf16.msra.mxu0 0
    %324 = vmatprep.subr.bf16.mxu0 0
    %325 = vmatpush2.bf16.msra.mxu0 0
    %326 = vmatprep.subr.bf16.mxu0 0
    %327 = vmatpush2.bf16.msra.mxu0 0
    %328 = vmatprep.subr.bf16.mxu0 0
    %329 = vmatpush2.bf16.msra.mxu0 0
    %330 = vmatprep.mubr.bf16.mxu0 0
    %331 = vmatmul.mubr.bf16.gmra.mxu0 %v137
    %v332 = vpop.f32.mrf.mxu0
    %v333 = vadd.f32 0.0, %v332
    %v334 = vpop.f32.mrf.mxu0
    %v335 = vadd.f32 0.0, %v334
    %v336 = vpop.f32.mrf.mxu0
    %v337 = vpop.f32.mrf.mxu0
    %338 = vdwg.mxu0
    %339 = vmatprep.subr.bf16.mxu0 0
    %340 = vmatpush1.bf16.msra.mxu0 %v273
    %341 = vmatprep.subr.bf16.mxu0 0
    %342 = vmatpush1.bf16.msra.mxu0 %v270
    %343 = vmatprep.subr.bf16.mxu0 0
    %344 = vmatpush1.bf16.msra.mxu0 %v267
    %345 = vmatprep.subr.bf16.mxu0 0
    %346 = vmatpush1.bf16.msra.mxu0 %v264
    %347 = vmatprep.subr.bf16.mxu0 0
    %348 = vmatpush1.bf16.msra.mxu0 %v261
    %349 = vmatprep.subr.bf16.mxu0 0
    %350 = vmatpush1.bf16.msra.mxu0 %v258
    %351 = vmatprep.subr.bf16.mxu0 0
    %352 = vmatpush1.bf16.msra.mxu0 %v255
    %353 = vmatprep.subr.bf16.mxu0 0
    %354 = vmatpush1.bf16.msra.mxu0 %v252
    %355 = vmatprep.subr.bf16.mxu0 0
    %356 = vmatpush2.bf16.msra.mxu0 0
    %357 = vmatprep.subr.bf16.mxu0 0
    %358 = vmatpush2.bf16.msra.mxu0 0
    %359 = vmatprep.subr.bf16.mxu0 0
    %360 = vmatpush2.bf16.msra.mxu0 0
    %361 = vmatprep.subr.bf16.mxu0 0
    %362 = vmatpush2.bf16.msra.mxu0 0
    %363 = vmatprep.subr.bf16.mxu0 0
    %364 = vmatpush2.bf16.msra.mxu0 0
    %365 = vmatprep.subr.bf16.mxu0 0
    %366 = vmatpush2.bf16.msra.mxu0 0
    %367 = vmatprep.subr.bf16.mxu0 0
    %368 = vmatpush2.bf16.msra.mxu0 0
    %369 = vmatprep.subr.bf16.mxu0 0
    %370 = vmatpush2.bf16.msra.mxu0 0
    %371 = vmatprep.mubr.bf16.mxu0 0
    %372 = vmatmul.mubr.bf16.gmra.mxu0 %v137
    %v373 = vpop.f32.mrf.mxu0
    %v374 = vadd.f32 0.0, %v373
    %v375 = vpop.f32.mrf.mxu0
    %v376 = vpop.f32.mrf.mxu0
    %v377 = vpop.f32.mrf.mxu0
    %378 = vdwg.mxu0
    %v381 = vunpack.c.l.s4 1966171168
    %v382 = vunpack.c.0.s8 %v381
    %v383 = vlaneseq
    %v384 = vshrl.u32 %v383, 7
    %v385 = vsub.s32 %v382, %v384
    %v386 = vrot.slane %v333, %v385
    %v387 = vcombine.high %v386, %v386
    %v389 = vunpack.c.l.s4 1966171168
    %v390 = vunpack.c.0.s8 %v389
    %v391 = vlaneseq
    %v392 = vshrl.u32 %v391, 7
    %v393 = vsub.s32 %v390, %v392
    %v394 = vrot.slane %v386, %v393
    %v396 = vunpack.c.l.s4 1966171168
    %v397 = vunpack.c.0.s8 %v396
    %v398 = vlaneseq
    %v399 = vshrl.u32 %v398, 7
    %v400 = vsub.s32 %v397, %v399
    %v401 = vrot.slane %v387, %v400
    %v404 = vadd.f32 %v133, %v394
    %v405 = vadd.f32 %v136, %v401
    %v406 = vxor.u32 %v404, 2147483648
    %v407 = vxor.u32 %v405, 2147483648
    %v408 = vmul.f32 %v406, 1.442695
    %v409 = vpow.pop %v408
    %v410 = vmul.f32 %v407, 1.442695
    %v411 = vpow.pop %v410
    %v412 = vadd.f32 %v409, 1.0
    %v413 = vadd.f32 %v411, 1.0
    %v414 = vrcp.pop %v412
    %v415 = vmul.f32 1.0, %v414
    %v416 = vrcp.pop %v413
    %v417 = vmul.f32 1.0, %v416
    %v420 = vrot.slane %v133, 1
    %v421 = vrot.slane %v136, 1
    %v426 = vunpack.c.l.s4 1966171168
    %v427 = vunpack.c.0.s8 %v426
    %v428 = vlaneseq
    %v429 = vshrl.u32 %v428, 7
    %v430 = vsub.s32 %v427, %v429
    %v431 = vrot.slane %v335, %v430
    %v432 = vcombine.high %v431, %v431
    %v434 = vunpack.c.l.s4 1966171168
    %v435 = vunpack.c.0.s8 %v434
    %v436 = vlaneseq
    %v437 = vshrl.u32 %v436, 7
    %v438 = vsub.s32 %v435, %v437
    %v439 = vrot.slane %v431, %v438
    %v441 = vunpack.c.l.s4 1966171168
    %v442 = vunpack.c.0.s8 %v441
    %v443 = vlaneseq
    %v444 = vshrl.u32 %v443, 7
    %v445 = vsub.s32 %v442, %v444
    %v446 = vrot.slane %v432, %v445
    %v449 = vadd.f32 %v420, %v439
    %v450 = vadd.f32 %v421, %v446
    %v451 = vxor.u32 %v449, 2147483648
    %v452 = vxor.u32 %v450, 2147483648
    %v453 = vmul.f32 %v451, 1.442695
    %v454 = vpow.pop %v453
    %v455 = vmul.f32 %v452, 1.442695
    %v456 = vpow.pop %v455
    %v457 = vadd.f32 %v454, 1.0
    %v458 = vadd.f32 %v456, 1.0
    %v459 = vrcp.pop %v457
    %v460 = vmul.f32 1.0, %v459
    %v461 = vrcp.pop %v458
    %v462 = vmul.f32 1.0, %v461
    %v463 = vadd.f32 %v374, %v116
    %v466 = vunpack.c.l.s4 1966171168
    %v467 = vunpack.c.0.s8 %v466
    %v468 = vlaneseq
    %v469 = vshrl.u32 %v468, 7
    %v470 = vsub.s32 %v467, %v469
    %v471 = vrot.slane %v463, %v470
    %v472 = vcombine.high %v471, %v471
    %v474 = vunpack.c.l.s4 1966171168
    %v475 = vunpack.c.0.s8 %v474
    %v476 = vlaneseq
    %v477 = vshrl.u32 %v476, 7
    %v478 = vsub.s32 %v475, %v477
    %v479 = vrot.slane %v471, %v478
    %v481 = vunpack.c.l.s4 1966171168
    %v482 = vunpack.c.0.s8 %v481
    %v483 = vlaneseq
    %v484 = vshrl.u32 %v483, 7
    %v485 = vsub.s32 %v482, %v484
    %v486 = vrot.slane %v472, %v485
    %v489 = vmul.f32 %v415, %v479
    %v490 = vmul.f32 %v417, %v486
    %v491 = vrot.slane %v133, 2
    %v492 = vrot.slane %v136, 2
    %v495 = vadd.f32 %v491, %v489
    %v496 = vadd.f32 %v492, %v490
    %v497 = vtanh.pop %v495
    %v498 = vtanh.pop %v496
    %v499 = vsub.f32 1.0, %v460
    %v500 = vsub.f32 1.0, %v462
    %v501 = vmul.f32 %v499, %v497
    %v502 = vmul.f32 %v500, %v498
    %v505 = vunpack.c.l.s4 1966171168
    %v506 = vunpack.c.0.s8 %v505
    %v507 = vlaneseq
    %v508 = vshrl.u32 %v507, 7
    %v509 = vsub.s32 %v506, %v508
    %v510 = vrot.slane %v124, %v509
    %v511 = vcombine.high %v510, %v510
    %v513 = vunpack.c.l.s4 1966171168
    %v514 = vunpack.c.0.s8 %v513
    %v515 = vlaneseq
    %v516 = vshrl.u32 %v515, 7
    %v517 = vsub.s32 %v514, %v516
    %v518 = vrot.slane %v510, %v517
    %v520 = vunpack.c.l.s4 1966171168
    %v521 = vunpack.c.0.s8 %v520
    %v522 = vlaneseq
    %v523 = vshrl.u32 %v522, 7
    %v524 = vsub.s32 %v521, %v523
    %v525 = vrot.slane %v511, %v524
    %v528 = vmul.f32 %v460, %v518
    %v529 = vmul.f32 %v462, %v525
    %v530 = vadd.f32 %v501, %v528
    %v531 = vadd.f32 %v502, %v529
    %v534 = vcombine.low %v530, %v531
    %v536 = vunpack.c.l.s4 1966171168
    %v537 = vunpack.c.0.s8 %v536
    %v538 = vlaneseq
    %v539 = vshrl.u32 %v538, 7
    %v540 = vsub.s32 %v537, %v539
    %v541 = vrot.slane %v534, %v540
    %v543 = vunpack.c.l.s4 1966171168
    %v544 = vunpack.c.0.s8 %v543
    %v545 = vlaneseq
    %v546 = vshrl.u32 %v545, 7
    %v547 = vsub.s32 %v544, %v546
    %v548 = vrot.slane %v541, %v547
    %550 = vst [vmem:[#allocation3] sm:$0x3] %v548
    %s551 = scalar_lea.vmem [#allocation4], %s119
    %552 = vst [vmem:[%s551] sm:$0x1] %v530
    %553 = vst [vmem:[%s551 + $0x8] sm:$0x1] %v531
  $region52: #{auto_regressive_forward.4} parent=0 // loop_footer
    %s123 = sadd.s32 1, %s119
  $region53: #{auto_regressive_forward.4} parent=0 // loop_footer_branch
    %118 = sbr.rel target = $region49
  $region54: #{auto_regressive_forward.4} parent=0 // loop_exit
    _
  %v554 = vld [vmem:[#allocation4] sm:$0xff]
  %v555 = vld [vmem:[#allocation4 + $0x8] sm:$0xff]
  %v556 = vpack.c.bf16 %v554, %v554
  %v557 = vpack.c.bf16 %v555, %v555
  %558 = vst [vmem:[%s3] sm:$0xf] %v556
  %559 = vst [vmem:[%s3 + $0x4] sm:$0xf] %v557
  // Predicated region
  $region55: #{auto_regressive_forward.4} parent=0 // pred_check
    _
  $region56: #{auto_regressive_forward.4} parent=0 // pred_check_branch
    %561 = sbr.rel (0) target = $region58
  $region57: #{auto_regressive_forward.4} parent=0 // pred_region
    _
  $region58: #{auto_regressive_forward.4} parent=0 // pred_fallthru
    _
  // Predicated region
  $region59: #{auto_regressive_forward.4} parent=0 // pred_check
    _
  $region60: #{auto_regressive_forward.4} parent=0 // pred_check_branch
    %563 = sbr.rel (0) target = $region62
  $region61: #{auto_regressive_forward.4} parent=0 // pred_region
    _
  $region62: #{auto_regressive_forward.4} parent=0 // pred_fallthru
    _
  %564 = vsyncmov [#allocation5]
  %s565 = vpop.sfrf %564
  %p566 = scmp.eq.s32.totalorder %s565, 0
  %p567 = pneg %p566
  %569 = shalt.err (%p567)

</llo_original>
